<compile_context>
chip_gen: v7x
topology: tpu7x:2x2x1
jax: 0.10.0
libtpu: 0.0.40
codegen_flags: <defaults>
</compile_context>

<pallas_src>
import jax
import jax.numpy as jnp
from jax.experimental import pallas as pl
from jax.experimental.pallas import tpu as pltpu


def ffn_kernel(x_ref, w1_ref, b1_ref, w2_ref, b2_ref, o_ref, acc_ref):
    # Grid: (row_tiles, d_ff_tiles); axis 1 is the d_ff reduction ("arbitrary").
    k = pl.program_id(1)

    @pl.when(k == 0)
    def _():
        acc_ref[...] = jnp.zeros_like(acc_ref)

    # x arrives in its native dtype; cast at the matmul boundary (VPU work hides under MXU).
    x = x_ref[...].astype(jnp.bfloat16)                                # (TM, d_model) bf16

    h = jnp.dot(x, w1_ref[...], preferred_element_type=jnp.float32)    # (TM, TF) f32
    h = jnp.maximum(h + b1_ref[...].astype(jnp.float32), 0.0)          # bias + ReLU (exact per chunk)

    # TODO(synk): training-mode dropout is stochastic; identity (eval) semantics here.

    acc_ref[...] += jnp.dot(h.astype(jnp.bfloat16), w2_ref[...],
                            preferred_element_type=jnp.float32)         # (TM, d_model) f32 accumulate

    @pl.when(k == pl.num_programs(1) - 1)
    def _():
        y = acc_ref[...] + b2_ref[...].astype(jnp.float32)
        o_ref[...] = y.astype(o_ref.dtype)


def _round_up(x, m):
    return ((x + m - 1) // m) * m


def _choose_row_tile(n_rows):
    n8 = _round_up(n_rows, 8)
    if n8 <= 256:
        return n8                      # tiny case: one (padded) full-extent row block
    tm = 256                           # MXU-aligned on v6e/v7x, 2x MXU rows on v5e
    if n8 < 8 * tm:
        tm = 128                       # keep >= ~8 row steps for pipeline depth / megacore
    return tm


def _choose_ff_tile(d_ff, preferred=1024):
    if d_ff <= preferred:
        return d_ff
    for tf in (preferred, 512, 256, 128):
        if d_ff % tf == 0:
            return tf
    return d_ff                        # odd d_ff: whole extent (last dim must be %128 or full)


def _vmem_budget_bytes():
    try:
        cap = int(pltpu.get_tpu_info().vmem_capacity_bytes)
    except Exception:
        cap = 64 * 1024 * 1024         # conservative (v7x-sized) fallback
    return int(cap * 0.80)             # ~20% headroom for compiler scratch / double-buffers


def _estimate_vmem_bytes(tm, tf, d_model, x_itemsize, out_itemsize):
    x_tile = 2 * tm * d_model * x_itemsize           # double-buffered input tile
    w1 = 2 * d_model * tf * 2                        # bf16 chunk, double-buffered
    b1 = 2 * tf * 4
    w2 = 2 * tf * d_model * 2
    b2 = d_model * 4                                 # Buffered(1)
    out = 2 * tm * d_model * out_itemsize
    acc = tm * d_model * 4
    hidden = tm * tf * (4 + 2)                       # f32 h + bf16 repack (rough)
    return x_tile + w1 + b1 + w2 + b2 + out + acc + hidden


def prepare_params(params):
    """One-time conversion: bf16 matmul weights, f32 row-vector biases (call at init)."""
    d_ff = params["w1"].shape[1]
    d_model = params["w2"].shape[1]
    return {
        "w1": params["w1"].astype(jnp.bfloat16),
        "b1": params["b1"].reshape(1, d_ff).astype(jnp.float32),
        "w2": params["w2"].astype(jnp.bfloat16),
        "b2": params["b2"].reshape(1, d_model).astype(jnp.float32),
    }


def positionwise_feed_forward(x, params, *, block_rows=None, block_ff=None, out_dtype=None):
    """x: (..., d_model). params: w1 (d_model,d_ff), b1 (d_ff,), w2 (d_ff,d_model), b2 (d_model,)."""
    orig_shape = x.shape
    d_model = orig_shape[-1]
    w1, b1, w2, b2 = params["w1"], params["b1"], params["w2"], params["b2"]
    d_ff = w1.shape[1]

    # Weights should be prepared once via prepare_params(); tolerate raw f32 params too.
    if w1.dtype != jnp.bfloat16:
        w1 = w1.astype(jnp.bfloat16)
    if w2.dtype != jnp.bfloat16:
        w2 = w2.astype(jnp.bfloat16)
    b1 = b1.reshape(1, d_ff).astype(jnp.float32)
    b2 = b2.reshape(1, d_model).astype(jnp.float32)

    out_dtype = out_dtype if out_dtype is not None else x.dtype

    x2 = x.reshape(-1, d_model)
    n = x2.shape[0]

    tm = block_rows if block_rows is not None else _choose_row_tile(n)
    tf = block_ff if block_ff is not None else _choose_ff_tile(d_ff)
    assert d_ff % tf == 0, f"d_ff tile {tf} must divide d_ff {d_ff}"

    budget = _vmem_budget_bytes()
    # Shrink the d_ff chunk (keeping it a multiple of 128 that divides d_ff) if the tile
    # footprint would not fit the per-generation VMEM budget.
    while (_estimate_vmem_bytes(tm, tf, d_model, x2.dtype.itemsize,
                                jnp.dtype(out_dtype).itemsize) > budget
           and tf % 2 == 0 and (tf // 2) % 128 == 0 and d_ff % (tf // 2) == 0):
        tf //= 2

    # Pad rows to a multiple of the row tile (tail rows are computed then discarded).
    n_pad = _round_up(n, tm)
    if n_pad != n:
        x2 = jnp.pad(x2, ((0, n_pad - n), (0, 0)))

    grid = (n_pad // tm, d_ff // tf)

    flops = 4 * n * d_model * d_ff                   # two matmuls, 2 flops per MAC
    bytes_accessed = (
        n_pad * d_model * x2.dtype.itemsize                        # x read
        + grid[0] * 2 * d_model * d_ff * 2                         # bf16 W1+W2 streamed per row tile
        + n_pad * d_model * jnp.dtype(out_dtype).itemsize          # out write
    )

    grid_spec = pltpu.PrefetchScalarGridSpec(
        num_scalar_prefetch=0,
        grid=grid,
        in_specs=[
            pl.BlockSpec((tm, d_model), lambda i, k: (i, 0)),      # x row tile (constant over k)
            pl.BlockSpec((d_model, tf), lambda i, k: (0, k)),      # W1 column chunk (double-buffered)
            pl.BlockSpec((1, tf), lambda i, k: (0, k)),            # b1 chunk
            pl.BlockSpec((tf, d_model), lambda i, k: (k, 0)),      # W2 row chunk (double-buffered)
            pl.BlockSpec((1, d_model), lambda i, k: (0, 0),        # b2: constant -> single buffer
                         pipeline_mode=pl.Buffered(1)),
        ],
        out_specs=pl.BlockSpec((tm, d_model), lambda i, k: (i, 0)),
        scratch_shapes=[pltpu.VMEM((tm, d_model), jnp.float32)],   # f32 accumulator
    )

    out = pl.pallas_call(
        ffn_kernel,
        out_shape=jax.ShapeDtypeStruct((n_pad, d_model), out_dtype),
        grid_spec=grid_spec,
        compiler_params=pltpu.CompilerParams(
            dimension_semantics=("parallel", "arbitrary"),
            vmem_limit_bytes=budget,
        ),
        cost_estimate=pl.CostEstimate(
            flops=flops, transcendentals=0, bytes_accessed=bytes_accessed),
    )(x2, w1, b1, w2, b2)

    if n_pad != n:
        out = out[:n]
    return out.reshape(orig_shape)


def reference_ffn(x, params):
    """Pure-JAX f32 reference mirroring the PyTorch forward (dropout = identity)."""
    h = jnp.maximum(x @ params["w1"] + params["b1"], 0.0)
    return h @ params["w2"] + params["b2"]


if __name__ == "__main__":
    # Small but representative shapes: d_model/d_ff multiples of 128 (lane-dense stores),
    # T=9 so the 18 rows exercise the row-padding path (padded to 24 with block_rows=8).
    B, T, D, D_FF = 2, 9, 128, 256

    key = jax.random.PRNGKey(0)
    kx, k1, k2, k3, k4 = jax.random.split(key, 5)
    x = jax.random.normal(kx, (B, T, D), jnp.float32)
    raw_params = {
        "w1": jax.random.normal(k1, (D, D_FF), jnp.float32) * 0.05,
        "b1": jax.random.normal(k2, (D_FF,), jnp.float32) * 0.05,
        "w2": jax.random.normal(k3, (D_FF, D), jnp.float32) * 0.05,
        "b2": jax.random.normal(k4, (D,), jnp.float32) * 0.05,
    }
    params = prepare_params(raw_params)   # bf16 weights converted once at init, not per call

    # block_rows=8 -> 3 row tiles (with padding); block_ff=128 -> 2 d_ff reduction steps,
    # exercising the accumulator init/finalize path.
    out = positionwise_feed_forward(x, params, block_rows=8, block_ff=128)
    out = jax.block_until_ready(out)

    ref = reference_ffn(x, raw_params)
    assert out.shape == x.shape
    max_err = float(jnp.max(jnp.abs(out - ref)))
    # bf16 matmul inputs with f32 accumulation -> loose-but-tight-enough tolerance.
    assert jnp.allclose(out, ref, atol=2e-2, rtol=2e-2), f"mismatch vs reference (max err {max_err})"

    print("KERNEL_OK")
</pallas_src>

<mosaic_0001>
module attributes {stable_mosaic.version = 11 : i64} {
  func.func @ffn_kernel(%arg0: i32, %arg1: i32, %arg2: memref<8x128xf32, #tpu.memory_space<vmem>>, %arg3: memref<128x128xbf16, #tpu.memory_space<vmem>>, %arg4: memref<1x128xf32, #tpu.memory_space<vmem>>, %arg5: memref<128x128xbf16, #tpu.memory_space<vmem>>, %arg6: memref<1x128xf32, #tpu.memory_space<vmem>>, %arg7: memref<8x128xf32, #tpu.memory_space<vmem>>, %arg8: memref<8x128xf32, #tpu.memory_space<vmem>>) attributes {dimension_semantics = [#tpu.dimension_semantics<parallel>, #tpu.dimension_semantics<arbitrary>], iteration_bounds = array<i64: 3, 2>, scalar_prefetch = 0 : i64, scratch_operands = 1 : i64, tpu.core_type = #tpu.core_type<tc>, window_params = [{transform_indices = @transform_0, window_bounds = array<i64: 8, 128>}, {transform_indices = @transform_1, window_bounds = array<i64: 128, 128>}, {transform_indices = @transform_2, window_bounds = array<i64: 1, 128>}, {transform_indices = @transform_3, window_bounds = array<i64: 128, 128>}, {pipeline_mode = #tpu.pipeline_mode<synchronous>, transform_indices = @transform_4, window_bounds = array<i64: 1, 128>}, {transform_indices = @transform_5, window_bounds = array<i64: 8, 128>}]} {
    %c0_i32 = arith.constant 0 : i32
    %0 = arith.cmpi eq, %arg1, %c0_i32 : i32
    %1 = arith.extui %0 : i1 to i32
    %c0_i32_0 = arith.constant 0 : i32
    %2 = arith.cmpi ne, %1, %c0_i32_0 : i32
    scf.if %2 {
      %cst_15 = arith.constant 0.000000e+00 : f32
      %21 = vector.broadcast %cst_15 : f32 to vector<8x128xf32>
      %c0_16 = arith.constant 0 : index
      %c0_17 = arith.constant 0 : index
      %22 = vector.load %arg8[%c0_16, %c0_17] : memref<8x128xf32, #tpu.memory_space<vmem>>, vector<8x128xf32>
      tpu.vector_store %arg8[%c0_16, %c0_17], %21 {strides = array<i32>} : memref<8x128xf32, #tpu.memory_space<vmem>>, vector<8x128xf32>,
    } else {
    }
    %c0 = arith.constant 0 : index
    %c0_1 = arith.constant 0 : index
    %3 = vector.load %arg2[%c0, %c0_1] : memref<8x128xf32, #tpu.memory_space<vmem>>, vector<8x128xf32>
    %4 = arith.truncf %3 : vector<8x128xf32> to vector<8x128xbf16>
    %c0_2 = arith.constant 0 : index
    %c0_3 = arith.constant 0 : index
    %5 = vector.load %arg3[%c0_2, %c0_3] : memref<128x128xbf16, #tpu.memory_space<vmem>>, vector<128x128xbf16>
    %cst = arith.constant dense<0.000000e+00> : vector<8x128xf32>
    %6 = tpu.matmul %4, %5, %cst {dimension_numbers = #tpu.dot_dimension_numbers<[1], [0], [0], [1], [0, 0, 1, 1], [], []>} : vector<8x128xbf16>, vector<128x128xbf16>, vector<8x128xf32> -> vector<8x128xf32>
    %c0_4 = arith.constant 0 : index
    %c0_5 = arith.constant 0 : index
    %7 = vector.load %arg4[%c0_4, %c0_5] : memref<1x128xf32, #tpu.memory_space<vmem>>, vector<1x128xf32>
    %8 = vector.broadcast %7 : vector<1x128xf32> to vector<8x128xf32>
    %9 = arith.addf %6, %8 : vector<8x128xf32>
    %cst_6 = arith.constant 0.000000e+00 : f32
    %10 = vector.broadcast %cst_6 : f32 to vector<8x128xf32>
    %11 = arith.maximumf %9, %10 : vector<8x128xf32>
    %c0_7 = arith.constant 0 : index
    %c0_8 = arith.constant 0 : index
    %12 = vector.load %arg8[%c0_7, %c0_8] : memref<8x128xf32, #tpu.memory_space<vmem>>, vector<8x128xf32>
    %13 = arith.truncf %11 : vector<8x128xf32> to vector<8x128xbf16>
    %c0_9 = arith.constant 0 : index
    %c0_10 = arith.constant 0 : index
    %14 = vector.load %arg5[%c0_9, %c0_10] : memref<128x128xbf16, #tpu.memory_space<vmem>>, vector<128x128xbf16>
    %cst_11 = arith.constant dense<0.000000e+00> : vector<8x128xf32>
    %15 = tpu.matmul %13, %14, %cst_11 {dimension_numbers = #tpu.dot_dimension_numbers<[1], [0], [0], [1], [0, 0, 1, 1], [], []>} : vector<8x128xbf16>, vector<128x128xbf16>, vector<8x128xf32> -> vector<8x128xf32>
    %16 = arith.addf %12, %15 : vector<8x128xf32>
    %c0_12 = arith.constant 0 : index
    %c0_13 = arith.constant 0 : index
    %17 = vector.load %arg8[%c0_12, %c0_13] : memref<8x128xf32, #tpu.memory_space<vmem>>, vector<8x128xf32>
    tpu.vector_store %arg8[%c0_12, %c0_13], %16 {strides = array<i32>} : memref<8x128xf32, #tpu.memory_space<vmem>>, vector<8x128xf32>,
    %c1_i32 = arith.constant 1 : i32
    %18 = arith.cmpi eq, %arg1, %c1_i32 : i32
    %19 = arith.extui %18 : i1 to i32
    %c0_i32_14 = arith.constant 0 : i32
    %20 = arith.cmpi ne, %19, %c0_i32_14 : i32
    scf.if %20 {
      %c0_15 = arith.constant 0 : index
      %c0_16 = arith.constant 0 : index
      %21 = vector.load %arg8[%c0_15, %c0_16] : memref<8x128xf32, #tpu.memory_space<vmem>>, vector<8x128xf32>
      %c0_17 = arith.constant 0 : index
      %c0_18 = arith.constant 0 : index
      %22 = vector.load %arg6[%c0_17, %c0_18] : memref<1x128xf32, #tpu.memory_space<vmem>>, vector<1x128xf32>
      %23 = vector.broadcast %22 : vector<1x128xf32> to vector<8x128xf32>
      %24 = arith.addf %21, %23 : vector<8x128xf32>
      %c0_19 = arith.constant 0 : index
      %c0_20 = arith.constant 0 : index
      %25 = vector.load %arg7[%c0_19, %c0_20] : memref<8x128xf32, #tpu.memory_space<vmem>>, vector<8x128xf32>
      tpu.vector_store %arg7[%c0_19, %c0_20], %24 {strides = array<i32>} : memref<8x128xf32, #tpu.memory_space<vmem>>, vector<8x128xf32>,
    } else {
    }
    return
  }
  func.func @transform_0(%arg0: i32, %arg1: i32) -> (i32, i32) {
    %c0_i32 = arith.constant 0 : i32
    %c0_i32_0 = arith.constant 0 : i32
    return %arg0, %c0_i32 : i32, i32
  }
  func.func @transform_1(%arg0: i32, %arg1: i32) -> (i32, i32) {
    %c0_i32 = arith.constant 0 : i32
    %c0_i32_0 = arith.constant 0 : i32
    return %c0_i32, %arg1 : i32, i32
  }
  func.func @transform_2(%arg0: i32, %arg1: i32) -> (i32, i32) {
    %c0_i32 = arith.constant 0 : i32
    %c0_i32_0 = arith.constant 0 : i32
    return %c0_i32, %arg1 : i32, i32
  }
  func.func @transform_3(%arg0: i32, %arg1: i32) -> (i32, i32) {
    %c0_i32 = arith.constant 0 : i32
    %c0_i32_0 = arith.constant 0 : i32
    return %arg1, %c0_i32 : i32, i32
  }
  func.func @transform_4(%arg0: i32, %arg1: i32) -> (i32, i32) {
    %c0_i32 = arith.constant 0 : i32
    %c0_i32_0 = arith.constant 0 : i32
    %c0_i32_1 = arith.constant 0 : i32
    return %c0_i32, %c0_i32_0 : i32, i32
  }
  func.func @transform_5(%arg0: i32, %arg1: i32) -> (i32, i32) {
    %c0_i32 = arith.constant 0 : i32
    %c0_i32_0 = arith.constant 0 : i32
    return %arg0, %c0_i32 : i32, i32
  }
}

</mosaic_0001>

<llo_original>
// kernel: tpu_custom_call.1
$region0: #{tpu_custom_call.1}
  #allocation0 [shape = 'u32[]', space=smem, size = 0x4, offset = 0x4, fixed_abs, tag = 'smem constant byte address 0x4 - core index']
  #allocation1 [shape = 'u32[144,128]{1,0:T(1,128)}', space=vmem, size = 0x12000, scoped, tag = 'internal scratch']
  #allocation2 [shape = 'f32[8,128]{1,0:T(8,128)}', space=vmem, size = 0x1000, scoped, tag = 'scratch operand']
  %s0 = inlined_call_operand.hbm [shape: f32[24,128], index: 0, kind: input, shape index: {}]
  %s1 = inlined_call_operand.hbm [shape: bf16[128,256], index: 1, kind: input, shape index: {}]
  %s2 = inlined_call_operand.vmem [shape: f32[1,256], index: 2, kind: input, shape index: {}]
  %s3 = inlined_call_operand.hbm [shape: bf16[256,128], index: 3, kind: input, shape index: {}]
  %s4 = inlined_call_operand.vmem [shape: f32[1,128], index: 4, kind: input, shape index: {}]
  %s5 = inlined_call_operand.hbm [shape: f32[24,128], index: 5, kind: output, shape index: {}]
  %s6 = sld [smem:[#allocation0]]
  $region73: #{tpu_custom_call.1} parent=0
    _
  %s8 = ssub.s32 1, %s6
  %s9 = scalar_select 0, %s8, %s6
  $region1: #{tpu_custom_call.1} parent=0
    #allocation3 [shape = 'u8[8192]{0}', space=vmem, size = 0x2000, scoped, tag = 'input window, operand 0']
    #allocation4 [shape = 's32[2]{0}', space=sflag, size = 0x8, scoped, tag = 'scoped memory for tpu_custom_call.1']
    #allocation5 [shape = 's32[2]{0}', space=sflag, size = 0x8, scoped, tag = 'scoped memory for tpu_custom_call.1']
    #allocation6 [shape = 'u8[65536]{0}', space=vmem, size = 0x10000, scoped, tag = 'input window, operand 1']
    #allocation7 [shape = 's32[2]{0}', space=sflag, size = 0x8, scoped, tag = 'scoped memory for tpu_custom_call.1']
    #allocation8 [shape = 'u8[65536]{0}', space=vmem, size = 0x10000, scoped, tag = 'input window, operand 3']
    #allocation9 [shape = 'u8[8192]{0}', space=vmem, size = 0x2000, scoped, tag = 'output window, operand 0']
    %10 = vsyncpa [#allocation4], 0
    %s11 = scalar_lea.sflag [#allocation4], 1
    %12 = vsyncpa %s11, 0
    %13 = vsyncpa [#allocation7], 0
    %s14 = scalar_lea.sflag [#allocation7], 1
    %15 = vsyncpa %s14, 0
    %16 = vsyncpa [#allocation5], 0
    %s17 = scalar_lea.sflag [#allocation5], 1
    %18 = vsyncpa %s17, 0
    loop: start=0, step=1, limit=8
    $region2: #{tpu_custom_call.1} parent=1 // loop_pre_header
      _
    $region3: #{tpu_custom_call.1} parent=1 // loop_header
      %s20 = sphi 0, %s24
      %p21 = scmp.ge.s32.totalorder %s20, 8
      %s27 = sphi 0, %s39
      %s28 = sphi 0, %s35
      %s29 = sphi 0, %s27
      %s30 = sphi 0, %s28
      %s31 = sphi 0, %s29
      %s32 = sphi 0, %s30
      %s42 = sphi 0, %s44
      %s45 = sphi 0, %s42
      %s46 = sphi 0, %s45
      %s62 = sphi 0, %s46
      %s68 = sphi 0, %s70
      %s71 = sphi 0, %s68
      %s72 = sphi 0, %s71
      %s88 = sphi 0, %s72
      %s94 = sphi 0, %s96
      %s97 = sphi 0, %s94
      %s98 = sphi 0, %s97
      %s114 = sphi 0, %s98
      %s120 = sphi 0, %s122
      %s123 = sphi 0, %s120
      %s124 = sphi 0, %s123
      %s140 = sphi 0, %s124
      %s144 = sphi 0, %s144
      %s146 = sphi 0, %s144
      %s147 = sphi 0, %s146
      %s161 = sphi 0, %s147
      %s167 = sphi 0, %s169
      %s170 = sphi 0, %s167
      %s171 = sphi 0, %s170
      %s187 = sphi 0, %s171
    $region4: #{tpu_custom_call.1} parent=1 // loop_header_branch
      %23 = sbr.rel (%p21) target = $region8
    $region5: #{tpu_custom_call.1} parent=1 // loop_body
      %s25 = ssub.s32 %s20, 1
      %s26 = ssub.s32 %s20, 2
      %s33 = sadd.s32 1, %s28
      %p34 = scmp.ge.s32.totalorder %s33, 2
      %s35 = scalar_select %p34, 0, %s33
      %s36 = sadd.s32 1, %s27
      %s37 = scalar_select %p34, %s36, %s27
      %p38 = scmp.ge.s32.totalorder %s37, 3
      %s39 = scalar_select %p38, 0, %s37
      %s40 = ssub.s32 %s27, %s39
      %p41 = scmp.eq.s32.totalorder %s40, 0
      %s43 = sadd.s32 %s42, 1
      %s44 = scalar_select %p41, %s42, %s43
      %p47 = pneg %p41
      %p48 = scmp.eq.s32.totalorder %s20, 5
      %p49 = por %p47, %p48
      %p50 = scmp.ne.s32.totalorder %s42, %s45
      %p51 = scmp.eq.s32.totalorder %s20, 0
      %p52 = por %p50, %p51
      %p53 = scmp.ne.s32.totalorder %s42, %s45
      %p54 = scmp.eq.s32.totalorder %s25, 5
      %p55 = por %p53, %p54
      %p56 = scmp.ne.s32.totalorder %s45, %s46
      %p57 = scmp.eq.s32.totalorder %s25, 0
      %p58 = por %p56, %p57
      %p59 = scmp.ne.s32.totalorder %s45, %s46
      %p60 = scmp.eq.s32.totalorder %s26, 5
      %p61 = por %p59, %p60
      %p63 = scmp.ne.s32.totalorder %s46, %s62
      %p64 = scmp.eq.s32.totalorder %s26, 0
      %p65 = por %p63, %p64
      %s66 = ssub.s32 %s28, %s35
      %p67 = scmp.eq.s32.totalorder %s66, 0
      %s69 = sadd.s32 %s68, 1
      %s70 = scalar_select %p67, %s68, %s69
      %p73 = pneg %p67
      %p74 = scmp.eq.s32.totalorder %s20, 5
      %p75 = por %p73, %p74
      %p76 = scmp.ne.s32.totalorder %s68, %s71
      %p77 = scmp.eq.s32.totalorder %s20, 0
      %p78 = por %p76, %p77
      %p79 = scmp.ne.s32.totalorder %s68, %s71
      %p80 = scmp.eq.s32.totalorder %s25, 5
      %p81 = por %p79, %p80
      %p82 = scmp.ne.s32.totalorder %s71, %s72
      %p83 = scmp.eq.s32.totalorder %s25, 0
      %p84 = por %p82, %p83
      %p85 = scmp.ne.s32.totalorder %s71, %s72
      %p86 = scmp.eq.s32.totalorder %s26, 5
      %p87 = por %p85, %p86
      %p89 = scmp.ne.s32.totalorder %s72, %s88
      %p90 = scmp.eq.s32.totalorder %s26, 0
      %p91 = por %p89, %p90
      %s92 = ssub.s32 %s28, %s35
      %p93 = scmp.eq.s32.totalorder %s92, 0
      %s95 = sadd.s32 %s94, 1
      %s96 = scalar_select %p93, %s94, %s95
      %p99 = pneg %p93
      %p100 = scmp.eq.s32.totalorder %s20, 5
      %p101 = por %p99, %p100
      %p102 = scmp.ne.s32.totalorder %s94, %s97
      %p103 = scmp.eq.s32.totalorder %s20, 0
      %p104 = por %p102, %p103
      %p105 = scmp.ne.s32.totalorder %s94, %s97
      %p106 = scmp.eq.s32.totalorder %s25, 5
      %p107 = por %p105, %p106
      %p108 = scmp.ne.s32.totalorder %s97, %s98
      %p109 = scmp.eq.s32.totalorder %s25, 0
      %p110 = por %p108, %p109
      %p111 = scmp.ne.s32.totalorder %s97, %s98
      %p112 = scmp.eq.s32.totalorder %s26, 5
      %p113 = por %p111, %p112
      %p115 = scmp.ne.s32.totalorder %s98, %s114
      %p116 = scmp.eq.s32.totalorder %s26, 0
      %p117 = por %p115, %p116
      %s118 = ssub.s32 %s28, %s35
      %p119 = scmp.eq.s32.totalorder %s118, 0
      %s121 = sadd.s32 %s120, 1
      %s122 = scalar_select %p119, %s120, %s121
      %p125 = pneg %p119
      %p126 = scmp.eq.s32.totalorder %s20, 5
      %p127 = por %p125, %p126
      %p128 = scmp.ne.s32.totalorder %s120, %s123
      %p129 = scmp.eq.s32.totalorder %s20, 0
      %p130 = por %p128, %p129
      %p131 = scmp.ne.s32.totalorder %s120, %s123
      %p132 = scmp.eq.s32.totalorder %s25, 5
      %p133 = por %p131, %p132
      %p134 = scmp.ne.s32.totalorder %s123, %s124
      %p135 = scmp.eq.s32.totalorder %s25, 0
      %p136 = por %p134, %p135
      %p137 = scmp.ne.s32.totalorder %s123, %s124
      %p138 = scmp.eq.s32.totalorder %s26, 5
      %p139 = por %p137, %p138
      %p141 = scmp.ne.s32.totalorder %s124, %s140
      %p142 = scmp.eq.s32.totalorder %s26, 0
      %p143 = por %p141, %p142
      %s145 = sadd.s32 %s144, 1
      %p148 = scmp.eq.s32.totalorder %s20, 5
      %p149 = scmp.ne.s32.totalorder %s144, %s146
      %p150 = scmp.eq.s32.totalorder %s20, 0
      %p151 = por %p149, %p150
      %p152 = scmp.ne.s32.totalorder %s144, %s146
      %p153 = scmp.eq.s32.totalorder %s25, 5
      %p154 = por %p152, %p153
      %p155 = scmp.ne.s32.totalorder %s146, %s147
      %p156 = scmp.eq.s32.totalorder %s25, 0
      %p157 = por %p155, %p156
      %p158 = scmp.ne.s32.totalorder %s146, %s147
      %p159 = scmp.eq.s32.totalorder %s26, 5
      %p160 = por %p158, %p159
      %p162 = scmp.ne.s32.totalorder %s147, %s161
      %p163 = scmp.eq.s32.totalorder %s26, 0
      %p164 = por %p162, %p163
      %s165 = ssub.s32 %s27, %s39
      %p166 = scmp.eq.s32.totalorder %s165, 0
      %s168 = sadd.s32 %s167, 1
      %s169 = scalar_select %p166, %s167, %s168
      %p172 = pneg %p166
      %p173 = scmp.eq.s32.totalorder %s20, 5
      %p174 = por %p172, %p173
      %p175 = scmp.ne.s32.totalorder %s167, %s170
      %p176 = scmp.eq.s32.totalorder %s20, 0
      %p177 = por %p175, %p176
      %p178 = scmp.ne.s32.totalorder %s167, %s170
      %p179 = scmp.eq.s32.totalorder %s25, 5
      %p180 = por %p178, %p179
      %p181 = scmp.ne.s32.totalorder %s170, %s171
      %p182 = scmp.eq.s32.totalorder %s25, 0
      %p183 = por %p181, %p182
      %p184 = scmp.ne.s32.totalorder %s170, %s171
      %p185 = scmp.eq.s32.totalorder %s26, 5
      %p186 = por %p184, %p185
      %p188 = scmp.ne.s32.totalorder %s171, %s187
      %p189 = scmp.eq.s32.totalorder %s26, 0
      %p190 = por %p188, %p189
      %p191 = scmp.le.s32.totalorder 1, %s20
      %p192 = scmp.lt.s32.totalorder %s20, 7
      %p193 = pnand %p191, %p192
      %p194 = pneg %p193
      // Predicated region
      $region9: #{tpu_custom_call.1} parent=5 // pred_check
        _
      $region10: #{tpu_custom_call.1} parent=5 // pred_check_branch
        %196 = sbr.rel (%p193) target = $region12
      $region11: #{tpu_custom_call.1} parent=5 // pred_region
        %s197 = ssub.s32 %s20, 1
        // Predicated region
        $region13: #{tpu_custom_call.1} parent=11 // pred_check
          %p198 = pneg %p157
        $region14: #{tpu_custom_call.1} parent=11 // pred_check_branch
          %200 = sbr.rel (%p198) target = $region16
        $region15: #{tpu_custom_call.1} parent=11 // pred_region
          _
        $region16: #{tpu_custom_call.1} parent=11 // pred_fallthru
          _
      $region12: #{tpu_custom_call.1} parent=5 // pred_fallthru
        _
      %p201 = scmp.lt.s32.totalorder %s20, 6
      // Predicated region
      $region17: #{tpu_custom_call.1} parent=5 // pred_check
        %p202 = pneg %p201
      $region18: #{tpu_custom_call.1} parent=5 // pred_check_branch
        %204 = sbr.rel (%p202) target = $region20
      $region19: #{tpu_custom_call.1} parent=5 // pred_region
        // Predicated region
        $region21: #{tpu_custom_call.1} parent=19 // pred_check
          %p205 = pneg %p52
        $region22: #{tpu_custom_call.1} parent=19 // pred_check_branch
          %207 = sbr.rel (%p205) target = $region24
        $region23: #{tpu_custom_call.1} parent=19 // pred_region
          %s208 = sand.u32 %s42, 1
          %s209 = scalar_lea.sflag [#allocation4], %s208
          %s210 = sand.u32 %s42, 1
          %s211 = smul.addr %s210, 8
          %s212 = scalar_lea.vmem [#allocation3], %s211
          %s214 = ssub.s32 128, 128
          %215 = vsyncadd %s209, %s214
          %s216 = smul.addr %s27, 128
          %s217 = scalar_lea.hbm %s0, %s216
          %s219 = sshll.u32 %s212, 4
          %s220 = int_to_ptr.vmem [resolvable:$true] %s219
          %222 = dma.hbm_to_vmem [thread:$0]  %s217, 128, %s220, %s209
        $region24: #{tpu_custom_call.1} parent=19 // pred_fallthru
          _
        // Predicated region
        $region25: #{tpu_custom_call.1} parent=19 // pred_check
          %p223 = pneg %p78
        $region26: #{tpu_custom_call.1} parent=19 // pred_check_branch
          %225 = sbr.rel (%p223) target = $region28
        $region27: #{tpu_custom_call.1} parent=19 // pred_region
          %s226 = sand.u32 %s20, 1
          %s227 = scalar_lea.sflag [#allocation7], %s226
          %s228 = sand.u32 %s68, 1
          %s229 = smul.addr %s228, 64
          %s230 = scalar_lea.vmem [#allocation6], %s229
          %s232 = ssub.s32 1024, 1024
          %233 = vsyncadd %s227, %s232
          %s234 = smul.addr %s28, 64
          %s235 = scalar_lea.hbm %s1, %s234
          %s236 = sshll.u32 %s230, 4
          %s237 = int_to_ptr.vmem [resolvable:$true] %s236
          %242 = dma.hbm_to_vmem [thread:$0]  %s235, 1024, %s237, %s227, 128, 64, 4
        $region28: #{tpu_custom_call.1} parent=19 // pred_fallthru
          _
        // Predicated region
        $region29: #{tpu_custom_call.1} parent=19 // pred_check
          %p243 = pneg %p104
        $region30: #{tpu_custom_call.1} parent=19 // pred_check_branch
          %245 = sbr.rel (%p243) target = $region32
        $region31: #{tpu_custom_call.1} parent=19 // pred_region
          %p246 = scmp.lt.s32.totalorder %s28, 1
          %s247 = scalar_select %p246, %s28, 1
          %s248 = scalar_lea.vmem %s2, %s247
        $region32: #{tpu_custom_call.1} parent=19 // pred_fallthru
          _
        // Predicated region
        $region33: #{tpu_custom_call.1} parent=19 // pred_check
          %p249 = pneg %p130
        $region34: #{tpu_custom_call.1} parent=19 // pred_check_branch
          %251 = sbr.rel (%p249) target = $region36
        $region35: #{tpu_custom_call.1} parent=19 // pred_region
          %s252 = sand.u32 %s20, 1
          %s253 = scalar_lea.sflag [#allocation7], %s252
          %s254 = sand.u32 %s120, 1
          %s255 = smul.addr %s254, 64
          %s256 = scalar_lea.vmem [#allocation8], %s255
          %s257 = smul.u32 16, %s28
          %s259 = ssub.s32 1024, 1024
          %260 = vsyncadd %s253, %s259
          %s261 = smul.addr %s257, 64
          %s262 = scalar_lea.hbm %s3, %s261
          %s263 = sshll.u32 %s256, 4
          %s264 = int_to_ptr.vmem [resolvable:$true] %s263
          %269 = dma.hbm_to_vmem [thread:$0]  %s262, 1024, %s264, %s253, 64, 64, 4
        $region36: #{tpu_custom_call.1} parent=19 // pred_fallthru
          _
      $region20: #{tpu_custom_call.1} parent=5 // pred_fallthru
        _
      %p270 = scmp.le.s32.totalorder 1, %s20
      %p271 = scmp.lt.s32.totalorder %s20, 7
      %p272 = pnand %p270, %p271
      %p273 = pneg %p272
      // Predicated region
      $region37: #{tpu_custom_call.1} parent=5 // pred_check
        _
      $region38: #{tpu_custom_call.1} parent=5 // pred_check_branch
        %275 = sbr.rel (%p272) target = $region40
      $region39: #{tpu_custom_call.1} parent=5 // pred_region
        %s276 = ssub.s32 %s20, 1
        %s277 = sand.u32 %s45, 1
        %s278 = scalar_lea.sflag [#allocation4], %s277
        %s279 = sand.u32 %s45, 1
        %s280 = smul.addr %s279, 8
        %s281 = scalar_lea.vmem [#allocation3], %s280
        // Predicated region
        $region41: #{tpu_custom_call.1} parent=39 // pred_check
          %p282 = pneg %p58
        $region42: #{tpu_custom_call.1} parent=39 // pred_check_branch
          %284 = sbr.rel (%p282) target = $region44
        $region43: #{tpu_custom_call.1} parent=39 // pred_region
          %285 = dma.done %s278, 128
        $region44: #{tpu_custom_call.1} parent=39 // pred_fallthru
          _
        %s286 = sand.u32 %s25, 1
        %s287 = scalar_lea.sflag [#allocation7], %s286
        %s288 = sand.u32 %s71, 1
        %s289 = smul.addr %s288, 64
        %s290 = scalar_lea.vmem [#allocation6], %s289
        // Predicated region
        $region45: #{tpu_custom_call.1} parent=39 // pred_check
          %p291 = pneg %p84
        $region46: #{tpu_custom_call.1} parent=39 // pred_check_branch
          %293 = sbr.rel (%p291) target = $region48
        $region47: #{tpu_custom_call.1} parent=39 // pred_region
          %294 = dma.done %s287, 1024
        $region48: #{tpu_custom_call.1} parent=39 // pred_fallthru
          _
        %s295 = sand.u32 %s25, 1
        %s296 = scalar_lea.sflag [#allocation7], %s295
        %s297 = sand.u32 %s123, 1
        %s298 = smul.addr %s297, 64
        %s299 = scalar_lea.vmem [#allocation8], %s298
        // Predicated region
        $region49: #{tpu_custom_call.1} parent=39 // pred_check
          %p300 = pneg %p136
        $region50: #{tpu_custom_call.1} parent=39 // pred_check_branch
          %302 = sbr.rel (%p300) target = $region52
        $region51: #{tpu_custom_call.1} parent=39 // pred_region
          %303 = dma.done %s296, 1024
        $region52: #{tpu_custom_call.1} parent=39 // pred_fallthru
          _
        %s304 = sand.u32 %s45, 1
        %s305 = scalar_lea.sflag [#allocation4], %s304
        %s306 = sand.u32 %s45, 1
        %s307 = smul.addr %s306, 8
        %s308 = scalar_lea.vmem [#allocation3], %s307
        %p309 = pneg %p58
        %p310 = pneg %p55
        %s311 = sand.u32 %s25, 1
        %s312 = scalar_lea.sflag [#allocation7], %s311
        %s313 = sand.u32 %s71, 1
        %s314 = smul.addr %s313, 64
        %s315 = scalar_lea.vmem [#allocation6], %s314
        %p316 = pneg %p84
        %p317 = pneg %p81
        %p318 = scmp.lt.s32.totalorder %s30, 1
        %s319 = scalar_select %p318, %s30, 1
        %s320 = scalar_lea.vmem %s2, %s319
        %p321 = pneg %p110
        %p322 = pneg %p107
        %s323 = sand.u32 %s25, 1
        %s324 = scalar_lea.sflag [#allocation7], %s323
        %s325 = sand.u32 %s123, 1
        %s326 = smul.addr %s325, 64
        %s327 = scalar_lea.vmem [#allocation8], %s326
        %p328 = pneg %p136
        %p329 = pneg %p133
        %p330 = pneg %p157
        %p331 = pneg %p154
        %p332 = pneg %p183
        %p333 = pneg %p180
        %s334 = sand.u32 %s170, 1
        %s335 = scalar_lea.sflag [#allocation5], %s334
        %s336 = sand.u32 %s170, 1
        %s337 = smul.addr %s336, 8
        %s338 = scalar_lea.vmem [#allocation9], %s337
        %p339 = scmp.lt.s32.totalorder %s30, 1
        %s340 = scalar_select %p339, %s30, 1
        %s341 = scalar_lea.vmem %s2, %s340
        %s342 = smul.u32 16, %s30
        %p344 = scmp.eq.s32.totalorder %s30, 0
        // Predicated region
        $region53: #{tpu_custom_call.1} parent=39 // pred_check
          %p345 = pneg %p344
        $region54: #{tpu_custom_call.1} parent=39 // pred_check_branch
          %347 = sbr.rel (%p345) target = $region56
        $region55: #{tpu_custom_call.1} parent=39 // pred_region
          %348 = vst [vmem:[#allocation2] sm:$0xff] 0.0
        $region56: #{tpu_custom_call.1} parent=39 // pred_fallthru
          _
        %v349 = vld [vmem:[%s281] sm:$0xff]
        %v350 = vpack.c.bf16 %v349, %v349
        %v351 = vld [vmem:[%s290] sm:$0xf]
        %v352 = vld [vmem:[%s290 + $0x4] sm:$0xf]
        %v353 = vld [vmem:[%s290 + $0x8] sm:$0xf]
        %v354 = vld [vmem:[%s290 + $0xc] sm:$0xf]
        %v355 = vld [vmem:[%s290 + $0x10] sm:$0xf]
        %v356 = vld [vmem:[%s290 + $0x14] sm:$0xf]
        %v357 = vld [vmem:[%s290 + $0x18] sm:$0xf]
        %v358 = vld [vmem:[%s290 + $0x1c] sm:$0xf]
        %v359 = vld [vmem:[%s290 + $0x20] sm:$0xf]
        %v360 = vld [vmem:[%s290 + $0x24] sm:$0xf]
        %v361 = vld [vmem:[%s290 + $0x28] sm:$0xf]
        %v362 = vld [vmem:[%s290 + $0x2c] sm:$0xf]
        %v363 = vld [vmem:[%s290 + $0x30] sm:$0xf]
        %v364 = vld [vmem:[%s290 + $0x34] sm:$0xf]
        %v365 = vld [vmem:[%s290 + $0x38] sm:$0xf]
        %v366 = vld [vmem:[%s290 + $0x3c] sm:$0xf]
        %v367 = vld [vmem:[%s341] sm:$0x1]
        %v369 = vlaneseq
        %v370 = vshrl.u32 %v369, 7
        %v371 = vsub.s32 0, %v370
        %v372 = vrot.slane %v367, %v371
        %v390 = vunpack.c.l.b16 %v351
        %v391 = vunpack.c.l.b16 %v352
        %v392 = vunpack.c.l.b16 %v353
        %v393 = vunpack.c.l.b16 %v354
        %v394 = vunpack.c.l.b16 %v355
        %v395 = vunpack.c.l.b16 %v356
        %v396 = vunpack.c.l.b16 %v357
        %v397 = vunpack.c.l.b16 %v358
        %v398 = vunpack.c.l.b16 %v359
        %v399 = vunpack.c.l.b16 %v360
        %v400 = vunpack.c.l.b16 %v361
        %v401 = vunpack.c.l.b16 %v362
        %v402 = vunpack.c.l.b16 %v363
        %v403 = vunpack.c.l.b16 %v364
        %v404 = vunpack.c.l.b16 %v365
        %v405 = vunpack.c.l.b16 %v366
        %v406 = vpack.c.b16 %v391, %v390
        %v407 = vpack.c.b16 %v393, %v392
        %v408 = vpack.c.b16 %v395, %v394
        %v409 = vpack.c.b16 %v397, %v396
        %v410 = vpack.c.b16 %v399, %v398
        %v411 = vpack.c.b16 %v401, %v400
        %v412 = vpack.c.b16 %v403, %v402
        %v413 = vpack.c.b16 %v405, %v404
        %422 = vmatprep.subr.bf16.mxu0 0
        %423 = vmatpush1.bf16.msra.mxu0 %v406
        %424 = vmatprep.subr.bf16.mxu0 0
        %425 = vmatpush1.bf16.msra.mxu0 %v407
        %426 = vmatprep.subr.bf16.mxu0 0
        %427 = vmatpush1.bf16.msra.mxu0 %v408
        %428 = vmatprep.subr.bf16.mxu0 0
        %429 = vmatpush1.bf16.msra.mxu0 %v409
        %430 = vmatprep.subr.bf16.mxu0 0
        %431 = vmatpush1.bf16.msra.mxu0 %v410
        %432 = vmatprep.subr.bf16.mxu0 0
        %433 = vmatpush1.bf16.msra.mxu0 %v411
        %434 = vmatprep.subr.bf16.mxu0 0
        %435 = vmatpush1.bf16.msra.mxu0 %v412
        %436 = vmatprep.subr.bf16.mxu0 0
        %437 = vmatpush1.bf16.msra.mxu0 %v413
        %438 = vmatprep.subr.bf16.mxu0 0
        %439 = vmatpush1.bf16.msra.mxu0 0
        %440 = vmatprep.subr.bf16.mxu0 0
        %441 = vmatpush1.bf16.msra.mxu0 0
        %442 = vmatprep.subr.bf16.mxu0 0
        %443 = vmatpush1.bf16.msra.mxu0 0
        %444 = vmatprep.subr.bf16.mxu0 0
        %445 = vmatpush1.bf16.msra.mxu0 0
        %446 = vmatprep.subr.bf16.mxu0 0
        %447 = vmatpush1.bf16.msra.mxu0 0
        %448 = vmatprep.subr.bf16.mxu0 0
        %449 = vmatpush1.bf16.msra.mxu0 0
        %450 = vmatprep.subr.bf16.mxu0 0
        %451 = vmatpush1.bf16.msra.mxu0 0
        %452 = vmatprep.subr.bf16.mxu0 0
        %453 = vmatpush1.bf16.msra.mxu0 0
        %454 = vmatprep.mubr.bf16.mxu0 0
        %455 = vmatmul.mubr.bf16.gmra.mrb[0].mxu0 %v350
        %v456 = vpop.f32.mrb[0].mxu0
        %v457 = vadd.f32 %v372, %v456
        %v458 = vpop.f32.mrb[0].mxu0
        %v459 = vpop.f32.mrb[0].mxu0
        %v460 = vpop.f32.mrb[0].mxu0
        %461 = vdwg.mxu0
        %v462 = vmax.f32 %v457, 0.0
        %v463 = vld [vmem:[#allocation2] sm:$0xff]
        %v464 = vpack.c.bf16 %v462, %v462
        %v465 = vld [vmem:[%s299] sm:$0xf]
        %v466 = vld [vmem:[%s299 + $0x4] sm:$0xf]
        %v467 = vld [vmem:[%s299 + $0x8] sm:$0xf]
        %v468 = vld [vmem:[%s299 + $0xc] sm:$0xf]
        %v469 = vld [vmem:[%s299 + $0x10] sm:$0xf]
        %v470 = vld [vmem:[%s299 + $0x14] sm:$0xf]
        %v471 = vld [vmem:[%s299 + $0x18] sm:$0xf]
        %v472 = vld [vmem:[%s299 + $0x1c] sm:$0xf]
        %v473 = vld [vmem:[%s299 + $0x20] sm:$0xf]
        %v474 = vld [vmem:[%s299 + $0x24] sm:$0xf]
        %v475 = vld [vmem:[%s299 + $0x28] sm:$0xf]
        %v476 = vld [vmem:[%s299 + $0x2c] sm:$0xf]
        %v477 = vld [vmem:[%s299 + $0x30] sm:$0xf]
        %v478 = vld [vmem:[%s299 + $0x34] sm:$0xf]
        %v479 = vld [vmem:[%s299 + $0x38] sm:$0xf]
        %v480 = vld [vmem:[%s299 + $0x3c] sm:$0xf]
        %v497 = vunpack.c.l.b16 %v465
        %v498 = vunpack.c.l.b16 %v466
        %v499 = vunpack.c.l.b16 %v467
        %v500 = vunpack.c.l.b16 %v468
        %v501 = vunpack.c.l.b16 %v469
        %v502 = vunpack.c.l.b16 %v470
        %v503 = vunpack.c.l.b16 %v471
        %v504 = vunpack.c.l.b16 %v472
        %v505 = vunpack.c.l.b16 %v473
        %v506 = vunpack.c.l.b16 %v474
        %v507 = vunpack.c.l.b16 %v475
        %v508 = vunpack.c.l.b16 %v476
        %v509 = vunpack.c.l.b16 %v477
        %v510 = vunpack.c.l.b16 %v478
        %v511 = vunpack.c.l.b16 %v479
        %v512 = vunpack.c.l.b16 %v480
        %v513 = vpack.c.b16 %v498, %v497
        %v514 = vpack.c.b16 %v500, %v499
        %v515 = vpack.c.b16 %v502, %v501
        %v516 = vpack.c.b16 %v504, %v503
        %v517 = vpack.c.b16 %v506, %v505
        %v518 = vpack.c.b16 %v508, %v507
        %v519 = vpack.c.b16 %v510, %v509
        %v520 = vpack.c.b16 %v512, %v511
        %529 = vmatprep.subr.bf16.mxu0 0
        %530 = vmatpush1.bf16.msra.mxu0 %v513
        %531 = vmatprep.subr.bf16.mxu0 0
        %532 = vmatpush1.bf16.msra.mxu0 %v514
        %533 = vmatprep.subr.bf16.mxu0 0
        %534 = vmatpush1.bf16.msra.mxu0 %v515
        %535 = vmatprep.subr.bf16.mxu0 0
        %536 = vmatpush1.bf16.msra.mxu0 %v516
        %537 = vmatprep.subr.bf16.mxu0 0
        %538 = vmatpush1.bf16.msra.mxu0 %v517
        %539 = vmatprep.subr.bf16.mxu0 0
        %540 = vmatpush1.bf16.msra.mxu0 %v518
        %541 = vmatprep.subr.bf16.mxu0 0
        %542 = vmatpush1.bf16.msra.mxu0 %v519
        %543 = vmatprep.subr.bf16.mxu0 0
        %544 = vmatpush1.bf16.msra.mxu0 %v520
        %545 = vmatprep.subr.bf16.mxu0 0
        %546 = vmatpush1.bf16.msra.mxu0 0
        %547 = vmatprep.subr.bf16.mxu0 0
        %548 = vmatpush1.bf16.msra.mxu0 0
        %549 = vmatprep.subr.bf16.mxu0 0
        %550 = vmatpush1.bf16.msra.mxu0 0
        %551 = vmatprep.subr.bf16.mxu0 0
        %552 = vmatpush1.bf16.msra.mxu0 0
        %553 = vmatprep.subr.bf16.mxu0 0
        %554 = vmatpush1.bf16.msra.mxu0 0
        %555 = vmatprep.subr.bf16.mxu0 0
        %556 = vmatpush1.bf16.msra.mxu0 0
        %557 = vmatprep.subr.bf16.mxu0 0
        %558 = vmatpush1.bf16.msra.mxu0 0
        %559 = vmatprep.subr.bf16.mxu0 0
        %560 = vmatpush1.bf16.msra.mxu0 0
        %561 = vmatprep.mubr.bf16.mxu0 0
        %562 = vmatmul.mubr.bf16.gmra.mrb[0].mxu0 %v464
        %v563 = vpop.f32.mrb[0].mxu0
        %v564 = vadd.f32 0.0, %v563
        %v565 = vpop.f32.mrb[0].mxu0
        %v566 = vpop.f32.mrb[0].mxu0
        %v567 = vpop.f32.mrb[0].mxu0
        %568 = vdwg.mxu0
        %v569 = vadd.f32 %v463, %v564
        %570 = vst [vmem:[#allocation2] sm:$0xff] %v569
        %p571 = scmp.eq.s32.totalorder %s30, 1
        // Predicated region
        $region57: #{tpu_custom_call.1} parent=39 // pred_check
          %p572 = pneg %p571
        $region58: #{tpu_custom_call.1} parent=39 // pred_check_branch
          %574 = sbr.rel (%p572) target = $region60
        $region59: #{tpu_custom_call.1} parent=39 // pred_region
          %v575 = vld [vmem:[#allocation2] sm:$0xff]
          %v576 = vld [vmem:[%s4] sm:$0x1]
          %v578 = vlaneseq
          %v579 = vshrl.u32 %v578, 7
          %v580 = vsub.s32 0, %v579
          %v581 = vrot.slane %v576, %v580
          %v583 = vadd.f32 %v575, %v581
          %584 = vst [vmem:[%s338] sm:$0xff] %v583
        $region60: #{tpu_custom_call.1} parent=39 // pred_fallthru
          _
        %s585 = sand.u32 %s170, 1
        %s586 = scalar_lea.sflag [#allocation5], %s585
        %s587 = sand.u32 %s170, 1
        %s588 = smul.addr %s587, 8
        %s589 = scalar_lea.vmem [#allocation9], %s588
        // Predicated region
        $region61: #{tpu_custom_call.1} parent=39 // pred_check
          %p590 = pneg %p180
        $region62: #{tpu_custom_call.1} parent=39 // pred_check_branch
          %592 = sbr.rel (%p590) target = $region64
        $region63: #{tpu_custom_call.1} parent=39 // pred_region
          %s594 = ssub.s32 128, 128
          %595 = vsyncadd %s586, %s594
          %s596 = smul.addr %s29, 128
          %s597 = scalar_lea.hbm %s5, %s596
          %s599 = sshll.u32 %s589, 4
          %s600 = int_to_ptr.vmem [resolvable:$true] %s599
          %602 = dma.vmem_to_hbm [thread:$0]  %s600, 128, %s597, %s586
        $region64: #{tpu_custom_call.1} parent=39 // pred_fallthru
          _
      $region40: #{tpu_custom_call.1} parent=5 // pred_fallthru
        _
      %p603 = scmp.le.s32.totalorder 2, %s20
      // Predicated region
      $region65: #{tpu_custom_call.1} parent=5 // pred_check
        %p604 = pneg %p603
      $region66: #{tpu_custom_call.1} parent=5 // pred_check_branch
        %606 = sbr.rel (%p604) target = $region68
      $region67: #{tpu_custom_call.1} parent=5 // pred_region
        %s607 = ssub.s32 %s20, 2
        // Predicated region
        $region69: #{tpu_custom_call.1} parent=67 // pred_check
          %p608 = pneg %p186
        $region70: #{tpu_custom_call.1} parent=67 // pred_check_branch
          %610 = sbr.rel (%p608) target = $region72
        $region71: #{tpu_custom_call.1} parent=67 // pred_region
          %s611 = sand.u32 %s171, 1
          %s612 = scalar_lea.sflag [#allocation5], %s611
          %s613 = sand.u32 %s171, 1
          %s614 = smul.addr %s613, 8
          %s615 = scalar_lea.vmem [#allocation9], %s614
          %616 = dma.done %s612, 128
        $region72: #{tpu_custom_call.1} parent=67 // pred_fallthru
          _
      $region68: #{tpu_custom_call.1} parent=5 // pred_fallthru
        _
    $region6: #{tpu_custom_call.1} parent=1 // loop_footer
      %s24 = sadd.s32 1, %s20
    $region7: #{tpu_custom_call.1} parent=1 // loop_footer_branch
      %19 = sbr.rel target = $region3
    $region8: #{tpu_custom_call.1} parent=1 // loop_exit
      _
    %617 = vsyncpa [#allocation4], 1
    %s618 = scalar_lea.sflag [#allocation4], 1
    %619 = vsyncpa %s618, 1
    %620 = vsyncpa [#allocation7], 1
    %s621 = scalar_lea.sflag [#allocation7], 1
    %622 = vsyncpa %s621, 1
    %623 = vsyncpa [#allocation5], 1
    %s624 = scalar_lea.sflag [#allocation5], 1
    %625 = vsyncpa %s624, 1

</llo_original>
